<compile_context>
chip_gen: v7x
topology: tpu7x:2x2x1
jax: 0.10.0
libtpu: 0.0.40
codegen_flags: <defaults>
</compile_context>

<pallas_src>
import jax
import jax.numpy as jnp
from jax import lax
from jax.experimental import pallas as pl
from jax.experimental.pallas import tpu as pltpu


# -----------------------------------------------------------------------------
# Hardware queries (best effort; wrong answers only cost perf, never correctness)
# -----------------------------------------------------------------------------
def _vmem_capacity_bytes():
    try:
        info = pltpu.get_tpu_info()
        for attr in ("vmem_capacity_bytes", "vmem_bytes", "vmem_size_bytes"):
            v = getattr(info, attr, None)
            if v:
                return int(v)
    except Exception:
        pass
    return 64 << 20  # conservative fallback (v7x physical VMEM)


def _tensorcores_per_chip():
    """How many TensorCores a single JAX device spans (split-K fan-out)."""
    try:
        kind = jax.devices()[0].device_kind.lower()
    except Exception:
        return 1
    if any(t in kind for t in ("lite", "v5e", "v6e", "v6")):
        return 1          # v5e / v6e: one TensorCore per chip
    if any(t in kind for t in ("v7", "7x", "v4", "v5p")):
        return 2          # v7x / megacore chips: two TensorCores
    return 1


def _cdiv(a, b):
    return -(-a // b)


# -----------------------------------------------------------------------------
# Kernel
# -----------------------------------------------------------------------------
def _partial_gram_kernel(feat_ref, out_ref):
    """Accumulate F_tile @ F_tile^T into this split's (1, n, n) output slab.

    Grid = (num_splits, k_steps); axis 0 is 'parallel' (one slab per
    TensorCore on v7x/megacore), axis 1 is the K reduction ('arbitrary').
    The output block index is constant over axis 1, so the slab stays
    VMEM-resident and doubles as the f32 accumulator (no extra scratch).
    """
    kk = pl.program_id(1)

    @pl.when(kk == 0)
    def _init():
        out_ref[...] = jnp.zeros_like(out_ref)

    f = feat_ref[...]
    # NT-form: contract the lane (K) dim of both operands -> F @ F^T on the
    # MXU with f32 accumulation; no materialized transpose.
    out_ref[0] += lax.dot_general(
        f, f,
        dimension_numbers=(((1,), (1,)), ((), ())),
        preferred_element_type=jnp.float32,
    )


# -----------------------------------------------------------------------------
# Tiling / VMEM budget helpers
# -----------------------------------------------------------------------------
def _choose_tiling(k, n, itemsize, num_splits, feat_budget_bytes, block_k=None):
    """Pick (k_padded, num_splits, tk, steps_per_split).

    K is measured in 128-lane blocks; it is padded (with zeros, exact for the
    Gram) so every split owns an integer number of tk-sized tiles.
    """
    nb = _cdiv(k, 128)                                  # 128-blocks along K
    num_splits = max(1, min(num_splits, nb))
    nb = _cdiv(nb, num_splits) * num_splits             # equal blocks per split
    nb_per = nb // num_splits

    if block_k is not None:
        assert block_k % 128 == 0 and block_k > 0, \
            "block_k must be a positive multiple of 128"
        tb = block_k // 128
        nb_per = _cdiv(nb_per, tb) * tb                 # honor requested tile
        nb = nb_per * num_splits
    else:
        # Largest multiple of 128 that divides the per-split K and keeps the
        # double-buffered (n, tk) feature tiles under the budget.
        cap_blocks = max(1, feat_budget_bytes // (2 * n * 128 * itemsize))
        tb = 1
        for m in range(1, nb_per + 1):
            if nb_per % m == 0 and m <= cap_blocks:
                tb = m

    return nb * 128, num_splits, tb * 128, nb_per // tb


def _vmem_limit_bytes(n, tk, itemsize, vmem_cap):
    """Scoped-VMEM budget: double-buffered (n, tk) feature tiles + the (n, n)
    f32 output slab (counted twice for buffering), with slack.  Raises instead
    of silently clamping when the estimate cannot fit the chip."""
    est = 2 * n * tk * itemsize + 2 * n * n * 4 + (4 << 20)
    est = max(est, 16 << 20)
    cap = int(vmem_cap * 3 // 4)
    if est > cap:
        raise ValueError(
            f"StyleLoss Pallas kernel needs ~{est >> 20} MiB of VMEM but only "
            f"~{cap >> 20} MiB is available on this chip; reduce N*C "
            f"(currently {n}) or pass a smaller block_k.")
    return int(est)


# -----------------------------------------------------------------------------
# pallas_call wrapper + JAX epilogue
# -----------------------------------------------------------------------------
def _partial_grams(features, *, block_k=None):
    """features: (n, K) in native dtype -> (num_splits, n, n) f32 partial Grams."""
    n, k = features.shape
    itemsize = features.dtype.itemsize
    vmem_cap = _vmem_capacity_bytes()
    num_splits = _tensorcores_per_chip()

    # Generation-aware tile budget: ~32 MiB on 128 MiB v5e/v6e, ~16 MiB on v7x.
    k_pad, num_splits, tk, steps = _choose_tiling(
        k, n, itemsize, num_splits, feat_budget_bytes=vmem_cap // 4,
        block_k=block_k)

    if k_pad != k:
        # Zero columns contribute nothing to F @ F^T -> padding is exact.
        features = jnp.pad(features, ((0, 0), (0, k_pad - k)))

    return pl.pallas_call(
        _partial_gram_kernel,
        out_shape=jax.ShapeDtypeStruct((num_splits, n, n), jnp.float32),
        grid_spec=pltpu.PrefetchScalarGridSpec(
            num_scalar_prefetch=0,
            grid=(num_splits, steps),
            in_specs=[
                pl.BlockSpec((n, tk), lambda c, kk: (0, c * steps + kk)),
            ],
            out_specs=pl.BlockSpec((1, n, n), lambda c, kk: (c, 0, 0)),
        ),
        compiler_params=pltpu.CompilerParams(
            dimension_semantics=("parallel", "arbitrary"),
            vmem_limit_bytes=_vmem_limit_bytes(n, tk, itemsize, vmem_cap),
        ),
        cost_estimate=pl.CostEstimate(
            flops=int(2 * n * n * k_pad),
            transcendentals=0,
            bytes_accessed=int(n * k_pad * itemsize + num_splits * n * n * 4),
        ),
    )(features)


def gram_matrix_pallas(features, abcd_norm, *, block_k=None):
    """features: (N*C, H*W). Returns G = features @ features.T / abcd_norm (f32)."""
    partials = _partial_grams(features, block_k=block_k)
    # Tiny epilogue: sum the per-core partial Grams and apply the scale.
    return jnp.sum(partials, axis=0) * jnp.float32(1.0 / abcd_norm)


# -----------------------------------------------------------------------------
# Module wrapper
# -----------------------------------------------------------------------------
def _flatten_nchw(x):
    # Native activation dtype is kept (bf16 inputs halve HBM traffic); the MXU
    # accumulates in f32 via preferred_element_type inside the kernel.
    a, b, c, d = x.shape
    return x.reshape(a * b, c * d), float(a * b * c * d)


class StyleLoss:
    """JAX/Pallas port of the PyTorch StyleLoss module."""

    def __init__(self, target_feature, *, block_k=None):
        self._block_k = block_k
        feats, norm = _flatten_nchw(target_feature)
        self.target = gram_matrix_pallas(feats, norm, block_k=block_k)
        self.loss = None

    def __call__(self, x):
        feats, norm = _flatten_nchw(x)
        g = gram_matrix_pallas(feats, norm, block_k=self._block_k)
        # MSE over an (n, n) matrix is a tiny JAX epilogue; the HBM-bound
        # Gram streaming is the Pallas kernel.
        self.loss = jnp.mean((g - self.target) ** 2)
        return x  # forward returns the input unchanged (loss is a side output)


# -----------------------------------------------------------------------------
# Reference + demo
# -----------------------------------------------------------------------------
def _reference_gram(x):
    a, b, c, d = x.shape
    f = x.reshape(a * b, c * d).astype(jnp.float32)
    return (f @ f.T) / (a * b * c * d)


if __name__ == "__main__":
    key = jax.random.PRNGKey(0)
    k1, k2, k3, k4 = jax.random.split(key, 4)

    # Primary small NCHW conv-feature shape: N*C = 8 rows, H*W = 256 contraction.
    target_feature = jax.random.normal(k1, (2, 4, 16, 16), dtype=jnp.float32)
    x = jax.random.normal(k2, (2, 4, 16, 16), dtype=jnp.float32)

    # block_k=128 forces multiple K tiles even at this toy size so the
    # accumulate / pl.when init path is exercised.
    module = StyleLoss(target_feature, block_k=128)
    out = module(x)

    out = jax.block_until_ready(out)
    loss = jax.block_until_ready(module.loss)

    g_ref = _reference_gram(x)
    t_ref = _reference_gram(target_feature)
    loss_ref = jnp.mean((g_ref - t_ref) ** 2)
    assert out.shape == x.shape
    assert jnp.allclose(out, x)
    assert jnp.allclose(module.target, t_ref, atol=1e-5, rtol=1e-5)
    assert jnp.allclose(loss, loss_ref, atol=1e-5, rtol=1e-5)

    # Second shape with H*W not a multiple of 128 exercises the zero-padding
    # path (exact for Gram: zero columns contribute nothing to F @ F^T).
    tf2 = jax.random.normal(k3, (2, 4, 10, 30), dtype=jnp.float32)
    x2 = jax.random.normal(k4, (2, 4, 10, 30), dtype=jnp.float32)
    m2 = StyleLoss(tf2)
    _ = m2(x2)
    loss2 = jax.block_until_ready(m2.loss)
    loss2_ref = jnp.mean((_reference_gram(x2) - _reference_gram(tf2)) ** 2)
    assert jnp.allclose(loss2, loss2_ref, atol=1e-5, rtol=1e-5)

    print("KERNEL_OK")
</pallas_src>

<mosaic_0001>
module attributes {stable_mosaic.version = 11 : i64} {
  func.func @_partial_gram_kernel(%arg0: i32, %arg1: i32, %arg2: memref<8x128xf32, #tpu.memory_space<vmem>>, %arg3: memref<1x8x8xf32, #tpu.memory_space<vmem>>) attributes {dimension_semantics = [#tpu.dimension_semantics<parallel>, #tpu.dimension_semantics<arbitrary>], iteration_bounds = array<i64: 1, 2>, scalar_prefetch = 0 : i64, scratch_operands = 0 : i64, tpu.core_type = #tpu.core_type<tc>, window_params = [{transform_indices = @transform_0, window_bounds = array<i64: 8, 128>}, {transform_indices = @transform_1, window_bounds = array<i64: 1, 8, 8>}]} {
    %c0_i32 = arith.constant 0 : i32
    %0 = arith.cmpi eq, %arg1, %c0_i32 : i32
    %1 = arith.extui %0 : i1 to i32
    %c0_i32_0 = arith.constant 0 : i32
    %2 = arith.cmpi ne, %1, %c0_i32_0 : i32
    scf.if %2 {
      %cst_8 = arith.constant 0.000000e+00 : f32
      %11 = vector.broadcast %cst_8 : f32 to vector<1x8x8xf32>
      %c0_9 = arith.constant 0 : index
      %c0_10 = arith.constant 0 : index
      %c0_11 = arith.constant 0 : index
      %12 = vector.load %arg3[%c0_9, %c0_10, %c0_11] : memref<1x8x8xf32, #tpu.memory_space<vmem>>, vector<1x8x8xf32>
      tpu.vector_store %arg3[%c0_9, %c0_10, %c0_11], %11 {strides = array<i32>} : memref<1x8x8xf32, #tpu.memory_space<vmem>>, vector<1x8x8xf32>,
    } else {
    }
    %c0 = arith.constant 0 : index
    %c0_1 = arith.constant 0 : index
    %3 = vector.load %arg2[%c0, %c0_1] : memref<8x128xf32, #tpu.memory_space<vmem>>, vector<8x128xf32>
    %c0_2 = arith.constant 0 : index
    %c0_3 = arith.constant 0 : index
    %c0_4 = arith.constant 0 : index
    %4 = vector.load %arg3[%c0_2, %c0_3, %c0_4] : memref<1x8x8xf32, #tpu.memory_space<vmem>>, vector<1x8x8xf32>
    %5 = vector.shape_cast %4 : vector<1x8x8xf32> to vector<8x8xf32>
    %cst = arith.constant dense<0.000000e+00> : vector<8x8xf32>
    %6 = tpu.matmul %3, %3, %cst {dimension_numbers = #tpu.dot_dimension_numbers<[1], [1], [0], [0], [0, 0, 1, 0], [], []>} : vector<8x128xf32>, vector<8x128xf32>, vector<8x8xf32> -> vector<8x8xf32>
    %7 = arith.addf %5, %6 : vector<8x8xf32>
    %c0_5 = arith.constant 0 : index
    %c0_6 = arith.constant 0 : index
    %c0_7 = arith.constant 0 : index
    %8 = vector.load %arg3[%c0_5, %c0_6, %c0_7] : memref<1x8x8xf32, #tpu.memory_space<vmem>>, vector<1x8x8xf32>
    %9 = vector.shape_cast %8 : vector<1x8x8xf32> to vector<8x8xf32>
    %10 = vector.shape_cast %7 : vector<8x8xf32> to vector<1x8x8xf32>
    tpu.vector_store %arg3[%c0_5, %c0_6, %c0_7], %10 {strides = array<i32>} : memref<1x8x8xf32, #tpu.memory_space<vmem>>, vector<1x8x8xf32>,
    return
  }
  func.func @transform_0(%arg0: i32, %arg1: i32) -> (i32, i32) {
    %c2_i32 = arith.constant 2 : i32
    %0 = arith.muli %arg0, %c2_i32 : i32
    %1 = arith.addi %0, %arg1 : i32
    %c0_i32 = arith.constant 0 : i32
    %c0_i32_0 = arith.constant 0 : i32
    return %c0_i32, %1 : i32, i32
  }
  func.func @transform_1(%arg0: i32, %arg1: i32) -> (i32, i32, i32) {
    %c0_i32 = arith.constant 0 : i32
    %c0_i32_0 = arith.constant 0 : i32
    %c0_i32_1 = arith.constant 0 : i32
    return %arg0, %c0_i32, %c0_i32_0 : i32, i32, i32
  }
}

</mosaic_0001>

<llo_original>
// kernel: tpu_custom_call.1
$region0: #{tpu_custom_call.1}
  #allocation0 [shape = 'u32[]', space=smem, size = 0x4, offset = 0x4, fixed_abs, tag = 'smem constant byte address 0x4 - core index']
  #allocation1 [shape = 'u32[144,128]{1,0:T(1,128)}', space=vmem, size = 0x12000, scoped, tag = 'internal scratch']
  %s0 = inlined_call_operand.hbm [shape: f32[8,256], index: 0, kind: input, shape index: {}]
  %s1 = inlined_call_operand.hbm [shape: f32[1,8,8], index: 1, kind: output, shape index: {}]
  %s2 = sld [smem:[#allocation0]]
  $region45: #{tpu_custom_call.1} parent=0
    _
  %s4 = ssub.s32 1, %s2
  %s5 = scalar_select 0, %s4, %s2
  $region1: #{tpu_custom_call.1} parent=0
    #allocation2 [shape = 'u8[8192]{0}', space=vmem, size = 0x2000, scoped, tag = 'input window, operand 0']
    #allocation3 [shape = 's32[2]{0}', space=sflag, size = 0x8, scoped, tag = 'scoped memory for tpu_custom_call.1']
    #allocation4 [shape = 's32[2]{0}', space=sflag, size = 0x8, scoped, tag = 'scoped memory for tpu_custom_call.1']
    #allocation5 [shape = 'u8[4096]{0}', space=vmem, size = 0x1000, scoped, tag = 'output window, operand 0, single buffered']
    %6 = vsyncpa [#allocation3], 0
    %s7 = scalar_lea.sflag [#allocation3], 1
    %8 = vsyncpa %s7, 0
    %9 = vsyncpa [#allocation4], 0
    loop: start=0, step=1, limit=4
    $region2: #{tpu_custom_call.1} parent=1 // loop_pre_header
      _
    $region3: #{tpu_custom_call.1} parent=1 // loop_header
      %s11 = sphi 0, %s15
      %p12 = scmp.ge.s32.totalorder %s11, 4
      %s18 = sphi 0, %s30
      %s19 = sphi 0, %s26
      %s20 = sphi 0, %s18
      %s21 = sphi 0, %s19
      %s22 = sphi 0, %s20
      %s23 = sphi 0, %s21
      %s37 = sphi 0, %s39
      %s40 = sphi 0, %s37
      %s41 = sphi 0, %s40
      %s57 = sphi 0, %s41
      %s63 = sphi 0, %s65
      %s66 = sphi 0, %s63
      %s67 = sphi 0, %s66
      %s83 = sphi 0, %s67
    $region4: #{tpu_custom_call.1} parent=1 // loop_header_branch
      %14 = sbr.rel (%p12) target = $region8
    $region5: #{tpu_custom_call.1} parent=1 // loop_body
      %s16 = ssub.s32 %s11, 1
      %s17 = ssub.s32 %s11, 2
      %s24 = sadd.s32 1, %s19
      %p25 = scmp.ge.s32.totalorder %s24, 2
      %s26 = scalar_select %p25, 0, %s24
      %s27 = sadd.s32 1, %s18
      %s28 = scalar_select %p25, %s27, %s18
      %p29 = scmp.ge.s32.totalorder %s28, 1
      %s30 = scalar_select %p29, 0, %s28
      %s31 = smul.u32 %s18, 2
      %s32 = sadd.s32 %s31, %s19
      %s33 = smul.u32 %s30, 2
      %s34 = sadd.s32 %s33, %s26
      %s35 = ssub.s32 %s32, %s34
      %p36 = scmp.eq.s32.totalorder %s35, 0
      %s38 = sadd.s32 %s37, 1
      %s39 = scalar_select %p36, %s37, %s38
      %p42 = pneg %p36
      %p43 = scmp.eq.s32.totalorder %s11, 1
      %p44 = por %p42, %p43
      %p45 = scmp.ne.s32.totalorder %s37, %s40
      %p46 = scmp.eq.s32.totalorder %s11, 0
      %p47 = por %p45, %p46
      %p48 = scmp.ne.s32.totalorder %s37, %s40
      %p49 = scmp.eq.s32.totalorder %s16, 1
      %p50 = por %p48, %p49
      %p51 = scmp.ne.s32.totalorder %s40, %s41
      %p52 = scmp.eq.s32.totalorder %s16, 0
      %p53 = por %p51, %p52
      %p54 = scmp.ne.s32.totalorder %s40, %s41
      %p55 = scmp.eq.s32.totalorder %s17, 1
      %p56 = por %p54, %p55
      %p58 = scmp.ne.s32.totalorder %s41, %s57
      %p59 = scmp.eq.s32.totalorder %s17, 0
      %p60 = por %p58, %p59
      %s61 = ssub.s32 %s18, %s30
      %p62 = scmp.eq.s32.totalorder %s61, 0
      %s64 = sadd.s32 %s63, 1
      %s65 = scalar_select %p62, %s63, %s64
      %p68 = pneg %p62
      %p69 = scmp.eq.s32.totalorder %s11, 1
      %p70 = por %p68, %p69
      %p71 = scmp.ne.s32.totalorder %s63, %s66
      %p72 = scmp.eq.s32.totalorder %s11, 0
      %p73 = por %p71, %p72
      %p74 = scmp.ne.s32.totalorder %s63, %s66
      %p75 = scmp.eq.s32.totalorder %s16, 1
      %p76 = por %p74, %p75
      %p77 = scmp.ne.s32.totalorder %s66, %s67
      %p78 = scmp.eq.s32.totalorder %s16, 0
      %p79 = por %p77, %p78
      %p80 = scmp.ne.s32.totalorder %s66, %s67
      %p81 = scmp.eq.s32.totalorder %s17, 1
      %p82 = por %p80, %p81
      %p84 = scmp.ne.s32.totalorder %s67, %s83
      %p85 = scmp.eq.s32.totalorder %s17, 0
      %p86 = por %p84, %p85
      %p87 = scmp.le.s32.totalorder 1, %s11
      %p88 = scmp.lt.s32.totalorder %s11, 3
      %p89 = pnand %p87, %p88
      %p90 = pneg %p89
      // Predicated region
      $region9: #{tpu_custom_call.1} parent=5 // pred_check
        _
      $region10: #{tpu_custom_call.1} parent=5 // pred_check_branch
        %92 = sbr.rel (%p89) target = $region12
      $region11: #{tpu_custom_call.1} parent=5 // pred_region
        %s93 = ssub.s32 %s11, 1
      $region12: #{tpu_custom_call.1} parent=5 // pred_fallthru
        _
      %p94 = scmp.lt.s32.totalorder %s11, 2
      // Predicated region
      $region13: #{tpu_custom_call.1} parent=5 // pred_check
        %p95 = pneg %p94
      $region14: #{tpu_custom_call.1} parent=5 // pred_check_branch
        %97 = sbr.rel (%p95) target = $region16
      $region15: #{tpu_custom_call.1} parent=5 // pred_region
        // Predicated region
        $region17: #{tpu_custom_call.1} parent=15 // pred_check
          %p98 = pneg %p47
        $region18: #{tpu_custom_call.1} parent=15 // pred_check_branch
          %100 = sbr.rel (%p98) target = $region20
        $region19: #{tpu_custom_call.1} parent=15 // pred_region
          %s101 = sand.u32 %s37, 1
          %s102 = scalar_lea.sflag [#allocation3], %s101
          %s103 = sand.u32 %s37, 1
          %s104 = smul.addr %s103, 8
          %s105 = scalar_lea.vmem [#allocation2], %s104
          %s106 = smul.u32 %s18, 2
          %s107 = sadd.s32 %s106, %s19
          %s109 = ssub.s32 128, 128
          %110 = vsyncadd %s102, %s109
          %s111 = smul.addr %s107, 128
          %s112 = scalar_lea.hbm %s0, %s111
          %s114 = sshll.u32 %s105, 4
          %s115 = int_to_ptr.vmem [resolvable:$true] %s114
          %117 = dma.hbm_to_vmem [thread:$0]  %s112, 128, %s115, %s102
        $region20: #{tpu_custom_call.1} parent=15 // pred_fallthru
          _
      $region16: #{tpu_custom_call.1} parent=5 // pred_fallthru
        _
      %p118 = scmp.le.s32.totalorder 1, %s11
      %p119 = scmp.lt.s32.totalorder %s11, 3
      %p120 = pnand %p118, %p119
      %p121 = pneg %p120
      // Predicated region
      $region21: #{tpu_custom_call.1} parent=5 // pred_check
        _
      $region22: #{tpu_custom_call.1} parent=5 // pred_check_branch
        %123 = sbr.rel (%p120) target = $region24
      $region23: #{tpu_custom_call.1} parent=5 // pred_region
        %s124 = ssub.s32 %s11, 1
        %s125 = sand.u32 %s40, 1
        %s126 = scalar_lea.sflag [#allocation3], %s125
        %s127 = sand.u32 %s40, 1
        %s128 = smul.addr %s127, 8
        %s129 = scalar_lea.vmem [#allocation2], %s128
        // Predicated region
        $region25: #{tpu_custom_call.1} parent=23 // pred_check
          %p130 = pneg %p53
        $region26: #{tpu_custom_call.1} parent=23 // pred_check_branch
          %132 = sbr.rel (%p130) target = $region28
        $region27: #{tpu_custom_call.1} parent=23 // pred_region
          %133 = dma.done %s126, 128
        $region28: #{tpu_custom_call.1} parent=23 // pred_fallthru
          _
        %s134 = sand.u32 %s40, 1
        %s135 = scalar_lea.sflag [#allocation3], %s134
        %s136 = sand.u32 %s40, 1
        %s137 = smul.addr %s136, 8
        %s138 = scalar_lea.vmem [#allocation2], %s137
        %p139 = pneg %p53
        %p140 = pneg %p50
        %p141 = pneg %p79
        %p142 = pneg %p76
        %s143 = smul.u32 %s20, 2
        %s144 = sadd.s32 %s143, %s21
        %p145 = scmp.eq.s32.totalorder %s21, 0
        // Predicated region
        $region29: #{tpu_custom_call.1} parent=23 // pred_check
          %p146 = pneg %p145
        $region30: #{tpu_custom_call.1} parent=23 // pred_check_branch
          %148 = sbr.rel (%p146) target = $region32
        $region31: #{tpu_custom_call.1} parent=23 // pred_region
          %vm149 = vcmask 64512
          %150 = vst.msk [vmem:[#allocation5] sm:$0xff] %vm149, 0.0
        $region32: #{tpu_custom_call.1} parent=23 // pred_fallthru
          _
        %v151 = vld [vmem:[%s129] sm:$0xff]
        %v152 = vld [vmem:[#allocation5] sm:$0xff]
        %153 = vmatprep.subr.mxu0 0.0
        %154 = vmatpush1.xpose.msra.mxu0 %v151
        %155 = vmatprep.subr.mxu0 0.0
        %156 = vmatpush1.xpose.msra.mxu0 0.0
        %157 = vmatprep.subr.mxu0 0.0
        %158 = vmatpush1.xpose.msra.mxu0 0.0
        %159 = vmatprep.subr.mxu0 0.0
        %160 = vmatpush1.xpose.msra.mxu0 0.0
        %161 = vmatprep.subr.mxu0 0.0
        %162 = vmatpush1.xpose.msra.mxu0 0.0
        %163 = vmatprep.subr.mxu0 0.0
        %164 = vmatpush1.xpose.msra.mxu0 0.0
        %165 = vmatprep.subr.mxu0 0.0
        %166 = vmatpush1.xpose.msra.mxu0 0.0
        %167 = vmatprep.subr.mxu0 0.0
        %168 = vmatpush1.xpose.msra.mxu0 0.0
        %169 = vmatprep.subr.mxu0 0.0
        %170 = vmatpush1.xpose.msra.mxu0 0.0
        %171 = vmatprep.subr.mxu0 0.0
        %172 = vmatpush1.xpose.msra.mxu0 0.0
        %173 = vmatprep.subr.mxu0 0.0
        %174 = vmatpush1.xpose.msra.mxu0 0.0
        %175 = vmatprep.subr.mxu0 0.0
        %176 = vmatpush1.xpose.msra.mxu0 0.0
        %177 = vmatprep.subr.mxu0 0.0
        %178 = vmatpush1.xpose.msra.mxu0 0.0
        %179 = vmatprep.subr.mxu0 0.0
        %180 = vmatpush1.xpose.msra.mxu0 0.0
        %181 = vmatprep.subr.mxu0 0.0
        %182 = vmatpush1.xpose.msra.mxu0 0.0
        %183 = vmatprep.subr.mxu0 0.0
        %184 = vmatpush1.xpose.msra.mxu0 0.0
        %185 = vmatprep.subr.mxu0 0.0
        %186 = vmatpush1.xpose.msra.mxu0 0.0
        %187 = vmatprep.subr.mxu0 0.0
        %188 = vmatpush1.xpose.msra.mxu0 0.0
        %189 = vmatprep.subr.mxu0 0.0
        %190 = vmatpush1.xpose.msra.mxu0 0.0
        %191 = vmatprep.subr.mxu0 0.0
        %192 = vmatpush1.xpose.msra.mxu0 0.0
        %193 = vmatprep.subr.mxu0 0.0
        %194 = vmatpush1.xpose.msra.mxu0 0.0
        %195 = vmatprep.subr.mxu0 0.0
        %196 = vmatpush1.xpose.msra.mxu0 0.0
        %197 = vmatprep.subr.mxu0 0.0
        %198 = vmatpush1.xpose.msra.mxu0 0.0
        %199 = vmatprep.subr.mxu0 0.0
        %200 = vmatpush1.xpose.msra.mxu0 0.0
        %201 = vmatprep.subr.mxu0 0.0
        %202 = vmatpush1.xpose.msra.mxu0 0.0
        %203 = vmatprep.subr.mxu0 0.0
        %204 = vmatpush1.xpose.msra.mxu0 0.0
        %205 = vmatprep.subr.mxu0 0.0
        %206 = vmatpush1.xpose.msra.mxu0 0.0
        %207 = vmatprep.subr.mxu0 0.0
        %208 = vmatpush1.xpose.msra.mxu0 0.0
        %209 = vmatprep.subr.mxu0 0.0
        %210 = vmatpush1.xpose.msra.mxu0 0.0
        %211 = vmatprep.subr.mxu0 0.0
        %212 = vmatpush1.xpose.msra.mxu0 0.0
        %213 = vmatprep.subr.mxu0 0.0
        %214 = vmatpush1.xpose.msra.mxu0 0.0
        %215 = vmatprep.subr.mxu0 0.0
        %216 = vmatpush1.xpose.msra.mxu0 0.0
        %217 = vmatprep.mubr.f32.mxu0 0.0
        %218 = vmatmul.mubr.f32.gmra.mrb[0].mxu0 %v151
        %v219 = vpop.f32.mrb[0].mxu0
        %v220 = vadd.f32 0.0, %v219
        %v221 = vpop.f32.mrb[0].mxu0
        %222 = vdwg.mxu0
        %v223 = vadd.f32 %v152, %v220
        %vm224 = vcmask 64512
        %225 = vst.msk [vmem:[#allocation5] sm:$0xff] %vm224, %v223
        // Predicated region
        $region33: #{tpu_custom_call.1} parent=23 // pred_check
          %p226 = pneg %p76
        $region34: #{tpu_custom_call.1} parent=23 // pred_check_branch
          %228 = sbr.rel (%p226) target = $region36
        $region35: #{tpu_custom_call.1} parent=23 // pred_region
          %s230 = ssub.s32 128, 128
          %231 = vsyncadd [#allocation4], %s230
          %s232 = smul.addr %s20, 128
          %s233 = scalar_lea.hbm %s1, %s232
          %s235 = sshll.u32 [#allocation5], 4
          %s236 = int_to_ptr.vmem [resolvable:$true] %s235
          %238 = dma.vmem_to_hbm [thread:$0]  %s236, 128, %s233, [#allocation4]
        $region36: #{tpu_custom_call.1} parent=23 // pred_fallthru
          _
        // Predicated region
        $region37: #{tpu_custom_call.1} parent=23 // pred_check
          %p239 = pneg %p76
        $region38: #{tpu_custom_call.1} parent=23 // pred_check_branch
          %241 = sbr.rel (%p239) target = $region40
        $region39: #{tpu_custom_call.1} parent=23 // pred_region
          %242 = dma.done [#allocation4], 128
        $region40: #{tpu_custom_call.1} parent=23 // pred_fallthru
          _
      $region24: #{tpu_custom_call.1} parent=5 // pred_fallthru
        _
      %p243 = scmp.le.s32.totalorder 2, %s11
      // Predicated region
      $region41: #{tpu_custom_call.1} parent=5 // pred_check
        %p244 = pneg %p243
      $region42: #{tpu_custom_call.1} parent=5 // pred_check_branch
        %246 = sbr.rel (%p244) target = $region44
      $region43: #{tpu_custom_call.1} parent=5 // pred_region
        %s247 = ssub.s32 %s11, 2
      $region44: #{tpu_custom_call.1} parent=5 // pred_fallthru
        _
    $region6: #{tpu_custom_call.1} parent=1 // loop_footer
      %s15 = sadd.s32 1, %s11
    $region7: #{tpu_custom_call.1} parent=1 // loop_footer_branch
      %10 = sbr.rel target = $region3
    $region8: #{tpu_custom_call.1} parent=1 // loop_exit
      _
    %248 = vsyncpa [#allocation3], 1
    %s249 = scalar_lea.sflag [#allocation3], 1
    %250 = vsyncpa %s249, 1
    %251 = vsyncpa [#allocation4], 1
    %s252 = scalar_lea.sflag [#allocation4], 1
    %253 = vsyncpa %s252, 1

</llo_original>
